<compile_context>
chip_gen: v6e
topology: v6e:2x2x1
jax: 0.10.0
libtpu: 0.0.40
codegen_flags: <defaults>
</compile_context>

<pallas_src>
import jax
import jax.numpy as jnp
from jax.experimental import pallas as pl
from jax.experimental.pallas import tpu as pltpu


def _round_up(x, m):
    return (x + m - 1) // m * m


def _cdiv(a, b):
    return (a + b - 1) // b


def _conv_bn_relu_kernel(x_ref, w_ref, shift_ref, o_ref):
    # x_ref:     (NB, C_in_p, TL)    streamed activation slab
    # w_ref:     (C_out_p, C_in_p)   BN-scale-folded conv weight (resident)
    # shift_ref: (C_out_p, 1)        folded bias/BN shift, f32 (resident)
    # o_ref:     (NB, C_out_p, TL)
    w = w_ref[...]
    shift = shift_ref[...]
    for b in range(x_ref.shape[0]):           # static unroll, NB <= 32
        y = jnp.dot(w, x_ref[b], preferred_element_type=jnp.float32)
        o_ref[b] = jnp.maximum(y + shift, 0.0).astype(o_ref.dtype)


def conv_bn_relu_1d(x, weight, bias, gamma, beta, running_mean, running_var,
                    eps=1e-5):
    """x: (N, C_in, L); weight: (C_out, C_in, 1); rest: (C_out,). Eval-mode BN."""
    N, C_in, L = x.shape
    C_out = weight.shape[0]
    itemsize = jnp.dtype(x.dtype).itemsize

    # ---- fold BN (eval) + conv bias into a scaled weight and per-channel shift
    w2d = weight.reshape(C_out, C_in).astype(jnp.float32)
    scale = gamma.astype(jnp.float32) / jnp.sqrt(
        running_var.astype(jnp.float32) + eps)                     # (C_out,)
    w_folded = scale[:, None] * w2d                                # (C_out, C_in)
    shift = ((bias.astype(jnp.float32) - running_mean.astype(jnp.float32))
             * scale + beta.astype(jnp.float32))                   # (C_out,)

    # ---- channel alignment: dtype-native sublane packing; 256 for huge C (MXU)
    sublane = {4: 8, 2: 16, 1: 32}.get(itemsize, 8)

    def _chan_align(c):
        return _round_up(c, 256) if c >= 512 else _round_up(c, sublane)

    C_in_p, C_out_p = _chan_align(C_in), _chan_align(C_out)

    # ---- generation-aware VMEM budget (v7x has only 64 MiB per TensorCore)
    try:
        vmem_phys = int(pltpu.get_tpu_info().vmem_capacity_bytes)
    except Exception:
        vmem_phys = 64 * 1024 * 1024
    vmem_budget = min(int(vmem_phys * 0.6), 96 * 1024 * 1024)
    w_bytes = C_out_p * C_in_p * itemsize + C_out_p * 4            # resident

    # ---- L tile: ~2 MiB of streamed x+out bytes per step, bounded by VMEM
    per_lane_bytes = (C_in_p + C_out_p) * itemsize
    target_bytes = 2 * 1024 * 1024
    tl_bytes = _round_up(_cdiv(target_bytes, per_lane_bytes), 128)
    tl_vmem = max(128, (max(vmem_budget - 2 * w_bytes, 0)
                        // (2 * per_lane_bytes)) // 128 * 128)
    TL_cap = max(128, min(tl_bytes, tl_vmem))
    if N == 1 and L >= 512:
        # keep >= 2 L tiles so both v7x TensorCores get work
        TL_cap = min(TL_cap, max(128, _round_up(_cdiv(L, 2), 128)))

    if L <= TL_cap:
        TL, L_p = L, L            # full-extent L block: no L pad, no out slice
    else:
        # pick the 128-multiple TL <= cap that minimises L padding (largest tie)
        best_tl, best_lp = 128, _round_up(L, 128)
        t = 128
        while t <= TL_cap:
            lp = _round_up(L, t)
            if lp < best_lp or (lp == best_lp and t > best_tl):
                best_tl, best_lp = t, lp
            t += 128
        TL, L_p = best_tl, best_lp
    n_l = L_p // TL

    # ---- small-L / large-N: process several batch rows per grid step
    NB = 1
    if n_l == 1 and N > 1:
        per_step = per_lane_bytes * TL
        want = max(1, target_bytes // per_step)
        nb_vmem = max(1, max(vmem_budget - 2 * w_bytes, 0) // (2 * per_step))
        nb_par = max(1, N // 8)       # keep >= 8 grid steps when possible
        NB = int(min(want, nb_vmem, nb_par, N, 32))
        while NB > 1 and N % NB != 0:
            NB -= 1

    # ---- pad only when misaligned (aligned common case: zero extra HBM passes)
    pad_x = (C_in_p != C_in) or (L_p != L)
    x_in = jnp.pad(x, ((0, 0), (0, C_in_p - C_in), (0, L_p - L))) if pad_x else x
    w_p = w_folded
    if (C_out_p != C_out) or (C_in_p != C_in):
        w_p = jnp.pad(w_folded, ((0, C_out_p - C_out), (0, C_in_p - C_in)))
    w_p = w_p.astype(x.dtype)         # bf16 input -> bf16 weight (full-rate MXU)
    shift_p = shift if C_out_p == C_out else jnp.pad(shift, (0, C_out_p - C_out))
    shift_p = shift_p.reshape(C_out_p, 1)

    grid = (N // NB, n_l)

    # ---- VMEM footprint -> vmem_limit_bytes (never above physical VMEM)
    x_tile_b = NB * C_in_p * TL * itemsize
    o_tile_b = NB * C_out_p * TL * itemsize
    footprint = 2 * (x_tile_b + o_tile_b) + 2 * w_bytes
    vmem_limit = int(min(max(footprint * 5 // 4 + (4 << 20), 32 << 20),
                         int(vmem_phys * 0.9)))

    flops = 2 * N * C_out_p * C_in_p * L_p
    bytes_accessed = (N * C_in_p * L_p * itemsize
                      + N * C_out_p * L_p * itemsize
                      + C_out_p * C_in_p * itemsize + C_out_p * 4)

    out_p = pl.pallas_call(
        _conv_bn_relu_kernel,
        out_shape=jax.ShapeDtypeStruct((N, C_out_p, L_p), x.dtype),
        grid_spec=pltpu.PrefetchScalarGridSpec(
            num_scalar_prefetch=0,
            grid=grid,
            in_specs=[
                pl.BlockSpec((NB, C_in_p, TL), lambda n, l: (n, 0, l)),
                pl.BlockSpec((C_out_p, C_in_p), lambda n, l: (0, 0)),
                pl.BlockSpec((C_out_p, 1), lambda n, l: (0, 0)),
            ],
            out_specs=pl.BlockSpec((NB, C_out_p, TL), lambda n, l: (n, 0, l)),
        ),
        compiler_params=pltpu.CompilerParams(
            dimension_semantics=("parallel", "parallel"),
            vmem_limit_bytes=vmem_limit,
        ),
        cost_estimate=pl.CostEstimate(
            flops=flops, transcendentals=0, bytes_accessed=bytes_accessed),
    )(x_in, w_p, shift_p)

    if (C_out_p != C_out) or (L_p != L):
        out_p = out_p[:, :C_out, :L]   # strip padding only when it exists
    return out_p


def _reference(x, weight, bias, gamma, beta, running_mean, running_var,
               eps=1e-5):
    # Pure-JAX reference (Conv1d k=1 -> BN eval -> ReLU).
    w2d = weight.reshape(weight.shape[0], weight.shape[1])
    conv = jnp.einsum("oi,nil->nol", w2d, x) + bias[None, :, None]
    bn = (conv - running_mean[None, :, None]) / jnp.sqrt(
        running_var[None, :, None] + eps)
    bn = bn * gamma[None, :, None] + beta[None, :, None]
    return jnp.maximum(bn, 0.0)


if __name__ == "__main__":
    # Small shapes consistent with the module: batch=2, in_channels=4,
    # out_channels=8, sequence length L=16.
    N, C_in, C_out, L = 2, 4, 8, 16

    key = jax.random.PRNGKey(0)
    kx, kw, kb, kg, kbt, km, kv = jax.random.split(key, 7)

    x = jax.random.normal(kx, (N, C_in, L), dtype=jnp.float32)
    weight = jax.random.normal(kw, (C_out, C_in, 1), dtype=jnp.float32) * 0.1
    bias = jax.random.normal(kb, (C_out,), dtype=jnp.float32) * 0.1
    gamma = 1.0 + 0.1 * jax.random.normal(kg, (C_out,), dtype=jnp.float32)
    beta = 0.1 * jax.random.normal(kbt, (C_out,), dtype=jnp.float32)
    running_mean = 0.1 * jax.random.normal(km, (C_out,), dtype=jnp.float32)
    running_var = 1.0 + 0.1 * jnp.abs(
        jax.random.normal(kv, (C_out,), dtype=jnp.float32))

    out = conv_bn_relu_1d(x, weight, bias, gamma, beta,
                          running_mean, running_var)
    out = jax.block_until_ready(out)

    ref = _reference(x, weight, bias, gamma, beta, running_mean, running_var)
    assert out.shape == (N, C_out, L)
    assert jnp.allclose(out, ref, atol=1e-5, rtol=1e-5)

    print("KERNEL_OK")
</pallas_src>

<mosaic_0001>
module attributes {stable_mosaic.version = 11 : i64} {
  func.func @_conv_bn_relu_kernel(%arg0: i32, %arg1: i32, %arg2: memref<1x8x16xf32, #tpu.memory_space<vmem>>, %arg3: memref<8x8xf32, #tpu.memory_space<vmem>>, %arg4: memref<8x1xf32, #tpu.memory_space<vmem>>, %arg5: memref<1x8x16xf32, #tpu.memory_space<vmem>>) attributes {dimension_semantics = [#tpu.dimension_semantics<parallel>, #tpu.dimension_semantics<parallel>], iteration_bounds = array<i64: 2, 1>, scalar_prefetch = 0 : i64, scratch_operands = 0 : i64, tpu.core_type = #tpu.core_type<tc>, window_params = [{transform_indices = @transform_0, window_bounds = array<i64: 1, 8, 16>}, {pipeline_mode = #tpu.pipeline_mode<synchronous>, transform_indices = @transform_1, window_bounds = array<i64: 8, 8>}, {pipeline_mode = #tpu.pipeline_mode<synchronous>, transform_indices = @transform_2, window_bounds = array<i64: 8, 1>}, {transform_indices = @transform_3, window_bounds = array<i64: 1, 8, 16>}]} {
    %c0 = arith.constant 0 : index
    %c0_0 = arith.constant 0 : index
    %0 = vector.load %arg3[%c0, %c0_0] : memref<8x8xf32, #tpu.memory_space<vmem>>, vector<8x8xf32>
    %c0_1 = arith.constant 0 : index
    %c0_2 = arith.constant 0 : index
    %1 = vector.load %arg4[%c0_1, %c0_2] : memref<8x1xf32, #tpu.memory_space<vmem>>, vector<8x1xf32>
    %c0_3 = arith.constant 0 : index
    %c0_4 = arith.constant 0 : index
    %c0_5 = arith.constant 0 : index
    %2 = vector.load %arg2[%c0_3, %c0_4, %c0_5] : memref<1x8x16xf32, #tpu.memory_space<vmem>>, vector<1x8x16xf32>
    %3 = vector.shape_cast %2 : vector<1x8x16xf32> to vector<8x16xf32>
    %cst = arith.constant dense<0.000000e+00> : vector<8x16xf32>
    %4 = tpu.matmul %0, %3, %cst {dimension_numbers = #tpu.dot_dimension_numbers<[1], [0], [0], [1], [0, 0, 1, 1], [], []>} : vector<8x8xf32>, vector<8x16xf32>, vector<8x16xf32> -> vector<8x16xf32>
    %5 = vector.broadcast %1 : vector<8x1xf32> to vector<8x16xf32>
    %6 = arith.addf %4, %5 : vector<8x16xf32>
    %cst_6 = arith.constant 0.000000e+00 : f32
    %7 = vector.broadcast %cst_6 : f32 to vector<8x16xf32>
    %8 = arith.maximumf %6, %7 : vector<8x16xf32>
    %c0_7 = arith.constant 0 : index
    %c0_8 = arith.constant 0 : index
    %c0_9 = arith.constant 0 : index
    %9 = vector.load %arg5[%c0_7, %c0_8, %c0_9] : memref<1x8x16xf32, #tpu.memory_space<vmem>>, vector<1x8x16xf32>
    %10 = vector.shape_cast %9 : vector<1x8x16xf32> to vector<8x16xf32>
    %11 = vector.shape_cast %8 : vector<8x16xf32> to vector<1x8x16xf32>
    tpu.vector_store %arg5[%c0_7, %c0_8, %c0_9], %11 {strides = array<i32>} : memref<1x8x16xf32, #tpu.memory_space<vmem>>, vector<1x8x16xf32>,
    return
  }
  func.func @transform_0(%arg0: i32, %arg1: i32) -> (i32, i32, i32) {
    %c0_i32 = arith.constant 0 : i32
    %c0_i32_0 = arith.constant 0 : i32
    return %arg0, %c0_i32, %arg1 : i32, i32, i32
  }
  func.func @transform_1(%arg0: i32, %arg1: i32) -> (i32, i32) {
    %c0_i32 = arith.constant 0 : i32
    %c0_i32_0 = arith.constant 0 : i32
    %c0_i32_1 = arith.constant 0 : i32
    return %c0_i32, %c0_i32_0 : i32, i32
  }
  func.func @transform_2(%arg0: i32, %arg1: i32) -> (i32, i32) {
    %c0_i32 = arith.constant 0 : i32
    %c0_i32_0 = arith.constant 0 : i32
    %c0_i32_1 = arith.constant 0 : i32
    return %c0_i32, %c0_i32_0 : i32, i32
  }
  func.func @transform_3(%arg0: i32, %arg1: i32) -> (i32, i32, i32) {
    %c0_i32 = arith.constant 0 : i32
    %c0_i32_0 = arith.constant 0 : i32
    return %arg0, %c0_i32, %arg1 : i32, i32, i32
  }
}

</mosaic_0001>

<llo_original>
// kernel: tpu_custom_call.1
$region0: #{tpu_custom_call.1}
  #allocation0 [shape = 'u32[]', space=smem, size = 0x4, offset = 0x4, fixed_abs, tag = 'smem constant byte address 0x4 - core index']
  #allocation1 [shape = 'u32[144,128]{1,0:T(1,128)}', space=vmem, size = 0x12000, scoped, tag = 'internal scratch']
  %s0 = inlined_call_operand.hbm [shape: f32[2,8,16], index: 0, kind: input, shape index: {}]
  %s1 = inlined_call_operand.vmem [shape: f32[8,8], index: 1, kind: input, shape index: {}]
  %s2 = inlined_call_operand.vmem [shape: f32[8,1], index: 2, kind: input, shape index: {}]
  %s3 = inlined_call_operand.hbm [shape: f32[2,8,16], index: 3, kind: output, shape index: {}]
  %s4 = sld [smem:[#allocation0]]
  $region49: #{tpu_custom_call.1} parent=0
    _
  %s6 = ssub.s32 1, %s4
  %s7 = scalar_select 0, %s6, %s4
  $region1: #{tpu_custom_call.1} parent=0
    #allocation2 [shape = 'u8[8192]{0}', space=vmem, size = 0x2000, scoped, tag = 'input window, operand 0']
    #allocation3 [shape = 's32[2]{0}', space=sflag, size = 0x8, scoped, tag = 'scoped memory for tpu_custom_call.1']
    #allocation4 [shape = 's32[2]{0}', space=sflag, size = 0x8, scoped, tag = 'scoped memory for tpu_custom_call.1']
    #allocation5 [shape = 'u8[8192]{0}', space=vmem, size = 0x2000, scoped, tag = 'output window, operand 0']
    %8 = vsyncpa [#allocation3], 0
    %s9 = scalar_lea.sflag [#allocation3], 1
    %10 = vsyncpa %s9, 0
    %11 = vsyncpa [#allocation4], 0
    %s12 = scalar_lea.sflag [#allocation4], 1
    %13 = vsyncpa %s12, 0
    loop: start=0, step=1, limit=4
    $region2: #{tpu_custom_call.1} parent=1 // loop_pre_header
      _
    $region3: #{tpu_custom_call.1} parent=1 // loop_header
      %s15 = sphi 0, %s19
      %p16 = scmp.ge.s32.totalorder %s15, 4
      %s22 = sphi 0, %s34
      %s23 = sphi 0, %s30
      %s24 = sphi 0, %s22
      %s25 = sphi 0, %s23
      %s26 = sphi 0, %s24
      %s27 = sphi 0, %s25
      %s39 = sphi 0, %s41
      %s42 = sphi 0, %s39
      %s43 = sphi 0, %s42
      %s59 = sphi 0, %s43
      %s63 = sphi 0, %s63
      %s65 = sphi 0, %s63
      %s66 = sphi 0, %s65
      %s80 = sphi 0, %s66
      %s84 = sphi 0, %s84
      %s86 = sphi 0, %s84
      %s87 = sphi 0, %s86
      %s101 = sphi 0, %s87
      %s109 = sphi 0, %s111
      %s112 = sphi 0, %s109
      %s113 = sphi 0, %s112
      %s129 = sphi 0, %s113
    $region4: #{tpu_custom_call.1} parent=1 // loop_header_branch
      %18 = sbr.rel (%p16) target = $region8
    $region5: #{tpu_custom_call.1} parent=1 // loop_body
      %s20 = ssub.s32 %s15, 1
      %s21 = ssub.s32 %s15, 2
      %s28 = sadd.s32 1, %s23
      %p29 = scmp.ge.s32.totalorder %s28, 1
      %s30 = scalar_select %p29, 0, %s28
      %s31 = sadd.s32 1, %s22
      %s32 = scalar_select %p29, %s31, %s22
      %p33 = scmp.ge.s32.totalorder %s32, 2
      %s34 = scalar_select %p33, 0, %s32
      %s35 = ssub.s32 %s22, %s34
      %s36 = ssub.s32 %s23, %s30
      %s37 = sor.u32 %s35, %s36
      %p38 = scmp.eq.s32.totalorder %s37, 0
      %s40 = sadd.s32 %s39, 1
      %s41 = scalar_select %p38, %s39, %s40
      %p44 = pneg %p38
      %p45 = scmp.eq.s32.totalorder %s15, 1
      %p46 = por %p44, %p45
      %p47 = scmp.ne.s32.totalorder %s39, %s42
      %p48 = scmp.eq.s32.totalorder %s15, 0
      %p49 = por %p47, %p48
      %p50 = scmp.ne.s32.totalorder %s39, %s42
      %p51 = scmp.eq.s32.totalorder %s20, 1
      %p52 = por %p50, %p51
      %p53 = scmp.ne.s32.totalorder %s42, %s43
      %p54 = scmp.eq.s32.totalorder %s20, 0
      %p55 = por %p53, %p54
      %p56 = scmp.ne.s32.totalorder %s42, %s43
      %p57 = scmp.eq.s32.totalorder %s21, 1
      %p58 = por %p56, %p57
      %p60 = scmp.ne.s32.totalorder %s43, %s59
      %p61 = scmp.eq.s32.totalorder %s21, 0
      %p62 = por %p60, %p61
      %s64 = sadd.s32 %s63, 1
      %p67 = scmp.eq.s32.totalorder %s15, 1
      %p68 = scmp.ne.s32.totalorder %s63, %s65
      %p69 = scmp.eq.s32.totalorder %s15, 0
      %p70 = por %p68, %p69
      %p71 = scmp.ne.s32.totalorder %s63, %s65
      %p72 = scmp.eq.s32.totalorder %s20, 1
      %p73 = por %p71, %p72
      %p74 = scmp.ne.s32.totalorder %s65, %s66
      %p75 = scmp.eq.s32.totalorder %s20, 0
      %p76 = por %p74, %p75
      %p77 = scmp.ne.s32.totalorder %s65, %s66
      %p78 = scmp.eq.s32.totalorder %s21, 1
      %p79 = por %p77, %p78
      %p81 = scmp.ne.s32.totalorder %s66, %s80
      %p82 = scmp.eq.s32.totalorder %s21, 0
      %p83 = por %p81, %p82
      %s85 = sadd.s32 %s84, 1
      %p88 = scmp.eq.s32.totalorder %s15, 1
      %p89 = scmp.ne.s32.totalorder %s84, %s86
      %p90 = scmp.eq.s32.totalorder %s15, 0
      %p91 = por %p89, %p90
      %p92 = scmp.ne.s32.totalorder %s84, %s86
      %p93 = scmp.eq.s32.totalorder %s20, 1
      %p94 = por %p92, %p93
      %p95 = scmp.ne.s32.totalorder %s86, %s87
      %p96 = scmp.eq.s32.totalorder %s20, 0
      %p97 = por %p95, %p96
      %p98 = scmp.ne.s32.totalorder %s86, %s87
      %p99 = scmp.eq.s32.totalorder %s21, 1
      %p100 = por %p98, %p99
      %p102 = scmp.ne.s32.totalorder %s87, %s101
      %p103 = scmp.eq.s32.totalorder %s21, 0
      %p104 = por %p102, %p103
      %s105 = ssub.s32 %s22, %s34
      %s106 = ssub.s32 %s23, %s30
      %s107 = sor.u32 %s105, %s106
      %p108 = scmp.eq.s32.totalorder %s107, 0
      %s110 = sadd.s32 %s109, 1
      %s111 = scalar_select %p108, %s109, %s110
      %p114 = pneg %p108
      %p115 = scmp.eq.s32.totalorder %s15, 1
      %p116 = por %p114, %p115
      %p117 = scmp.ne.s32.totalorder %s109, %s112
      %p118 = scmp.eq.s32.totalorder %s15, 0
      %p119 = por %p117, %p118
      %p120 = scmp.ne.s32.totalorder %s109, %s112
      %p121 = scmp.eq.s32.totalorder %s20, 1
      %p122 = por %p120, %p121
      %p123 = scmp.ne.s32.totalorder %s112, %s113
      %p124 = scmp.eq.s32.totalorder %s20, 0
      %p125 = por %p123, %p124
      %p126 = scmp.ne.s32.totalorder %s112, %s113
      %p127 = scmp.eq.s32.totalorder %s21, 1
      %p128 = por %p126, %p127
      %p130 = scmp.ne.s32.totalorder %s113, %s129
      %p131 = scmp.eq.s32.totalorder %s21, 0
      %p132 = por %p130, %p131
      %p133 = scmp.le.s32.totalorder 1, %s15
      %p134 = scmp.lt.s32.totalorder %s15, 3
      %p135 = pnand %p133, %p134
      %p136 = pneg %p135
      // Predicated region
      $region9: #{tpu_custom_call.1} parent=5 // pred_check
        _
      $region10: #{tpu_custom_call.1} parent=5 // pred_check_branch
        %138 = sbr.rel (%p135) target = $region12
      $region11: #{tpu_custom_call.1} parent=5 // pred_region
        %s139 = ssub.s32 %s15, 1
        // Predicated region
        $region13: #{tpu_custom_call.1} parent=11 // pred_check
          %p140 = pneg %p76
        $region14: #{tpu_custom_call.1} parent=11 // pred_check_branch
          %142 = sbr.rel (%p140) target = $region16
        $region15: #{tpu_custom_call.1} parent=11 // pred_region
          _
        $region16: #{tpu_custom_call.1} parent=11 // pred_fallthru
          _
        // Predicated region
        $region17: #{tpu_custom_call.1} parent=11 // pred_check
          %p143 = pneg %p97
        $region18: #{tpu_custom_call.1} parent=11 // pred_check_branch
          %145 = sbr.rel (%p143) target = $region20
        $region19: #{tpu_custom_call.1} parent=11 // pred_region
          _
        $region20: #{tpu_custom_call.1} parent=11 // pred_fallthru
          _
      $region12: #{tpu_custom_call.1} parent=5 // pred_fallthru
        _
      %p146 = scmp.lt.s32.totalorder %s15, 2
      // Predicated region
      $region21: #{tpu_custom_call.1} parent=5 // pred_check
        %p147 = pneg %p146
      $region22: #{tpu_custom_call.1} parent=5 // pred_check_branch
        %149 = sbr.rel (%p147) target = $region24
      $region23: #{tpu_custom_call.1} parent=5 // pred_region
        // Predicated region
        $region25: #{tpu_custom_call.1} parent=23 // pred_check
          %p150 = pneg %p49
        $region26: #{tpu_custom_call.1} parent=23 // pred_check_branch
          %152 = sbr.rel (%p150) target = $region28
        $region27: #{tpu_custom_call.1} parent=23 // pred_region
          %s153 = sand.u32 %s39, 1
          %s154 = scalar_lea.sflag [#allocation3], %s153
          %s155 = sand.u32 %s39, 1
          %s156 = smul.addr %s155, 8
          %s157 = scalar_lea.vmem [#allocation2], %s156
          %s159 = ssub.s32 128, 128
          %160 = vsyncadd %s154, %s159
          %s161 = sadd.s32 %s23, %s22
          %s162 = smul.addr %s161, 128
          %s163 = scalar_lea.hbm %s0, %s162
          %s165 = sshll.u32 %s157, 4
          %s166 = int_to_ptr.vmem [resolvable:$true] %s165
          %168 = dma.hbm_to_vmem [thread:$0]  %s163, 128, %s166, %s154
        $region28: #{tpu_custom_call.1} parent=23 // pred_fallthru
          _
      $region24: #{tpu_custom_call.1} parent=5 // pred_fallthru
        _
      %p169 = scmp.le.s32.totalorder 1, %s15
      %p170 = scmp.lt.s32.totalorder %s15, 3
      %p171 = pnand %p169, %p170
      %p172 = pneg %p171
      // Predicated region
      $region29: #{tpu_custom_call.1} parent=5 // pred_check
        _
      $region30: #{tpu_custom_call.1} parent=5 // pred_check_branch
        %174 = sbr.rel (%p171) target = $region32
      $region31: #{tpu_custom_call.1} parent=5 // pred_region
        %s175 = ssub.s32 %s15, 1
        %s176 = sand.u32 %s42, 1
        %s177 = scalar_lea.sflag [#allocation3], %s176
        %s178 = sand.u32 %s42, 1
        %s179 = smul.addr %s178, 8
        %s180 = scalar_lea.vmem [#allocation2], %s179
        // Predicated region
        $region33: #{tpu_custom_call.1} parent=31 // pred_check
          %p181 = pneg %p55
        $region34: #{tpu_custom_call.1} parent=31 // pred_check_branch
          %183 = sbr.rel (%p181) target = $region36
        $region35: #{tpu_custom_call.1} parent=31 // pred_region
          %184 = dma.done %s177, 128
        $region36: #{tpu_custom_call.1} parent=31 // pred_fallthru
          _
        %s185 = sand.u32 %s42, 1
        %s186 = scalar_lea.sflag [#allocation3], %s185
        %s187 = sand.u32 %s42, 1
        %s188 = smul.addr %s187, 8
        %s189 = scalar_lea.vmem [#allocation2], %s188
        %p190 = pneg %p55
        %p191 = pneg %p52
        %p192 = pneg %p76
        %p193 = pneg %p73
        %p194 = pneg %p97
        %p195 = pneg %p94
        %p196 = pneg %p125
        %p197 = pneg %p122
        %s198 = sand.u32 %s112, 1
        %s199 = scalar_lea.sflag [#allocation4], %s198
        %s200 = sand.u32 %s112, 1
        %s201 = smul.addr %s200, 8
        %s202 = scalar_lea.vmem [#allocation5], %s201
        %v203 = vld [vmem:[%s1] sm:$0xff]
        %v204 = vld [vmem:[%s2] sm:$0xff]
        %v205 = vld [vmem:[%s180] sm:$0xff]
        %207 = vset.pattern.permute.xlu0 0
        %208 = vperm.xlu0 %207, %v204
        %v209 = vpop.permute.xlu0 %208
        %vm211 = vcmask 64512
        %v213 = vsel %vm211, %v203, 0
        %215 = vmatprep.subr.mxu0 0.0
        %216 = vmatpush1.msra.mxu0 0.0
        %217 = vmatprep.subr.mxu0 0.0
        %218 = vmatpush1.msra.mxu0 0.0
        %219 = vmatprep.subr.mxu0 0.0
        %220 = vmatpush1.msra.mxu0 0.0
        %221 = vmatprep.subr.mxu0 0.0
        %222 = vmatpush1.msra.mxu0 0.0
        %223 = vmatprep.subr.mxu0 0.0
        %224 = vmatpush1.msra.mxu0 0.0
        %225 = vmatprep.subr.mxu0 0.0
        %226 = vmatpush1.msra.mxu0 0.0
        %227 = vmatprep.subr.mxu0 0.0
        %228 = vmatpush1.msra.mxu0 0.0
        %229 = vmatprep.subr.mxu0 0.0
        %230 = vmatpush1.msra.mxu0 0.0
        %231 = vmatprep.subr.mxu0 0.0
        %232 = vmatpush1.msra.mxu0 0.0
        %233 = vmatprep.subr.mxu0 0.0
        %234 = vmatpush1.msra.mxu0 0.0
        %235 = vmatprep.subr.mxu0 0.0
        %236 = vmatpush1.msra.mxu0 0.0
        %237 = vmatprep.subr.mxu0 0.0
        %238 = vmatpush1.msra.mxu0 0.0
        %239 = vmatprep.subr.mxu0 0.0
        %240 = vmatpush1.msra.mxu0 0.0
        %241 = vmatprep.subr.mxu0 0.0
        %242 = vmatpush1.msra.mxu0 0.0
        %243 = vmatprep.subr.mxu0 0.0
        %244 = vmatpush1.msra.mxu0 0.0
        %245 = vmatprep.subr.mxu0 0.0
        %246 = vmatpush1.msra.mxu0 %v205
        %247 = vmatprep.subr.mxu0 0.0
        %248 = vmatpush2.msra.mxu0 0.0
        %249 = vmatprep.subr.mxu0 0.0
        %250 = vmatpush2.msra.mxu0 0.0
        %251 = vmatprep.subr.mxu0 0.0
        %252 = vmatpush2.msra.mxu0 0.0
        %253 = vmatprep.subr.mxu0 0.0
        %254 = vmatpush2.msra.mxu0 0.0
        %255 = vmatprep.subr.mxu0 0.0
        %256 = vmatpush2.msra.mxu0 0.0
        %257 = vmatprep.subr.mxu0 0.0
        %258 = vmatpush2.msra.mxu0 0.0
        %259 = vmatprep.subr.mxu0 0.0
        %260 = vmatpush2.msra.mxu0 0.0
        %261 = vmatprep.subr.mxu0 0.0
        %262 = vmatpush2.msra.mxu0 0.0
        %263 = vmatprep.subr.mxu0 0.0
        %264 = vmatpush2.msra.mxu0 0.0
        %265 = vmatprep.subr.mxu0 0.0
        %266 = vmatpush2.msra.mxu0 0.0
        %267 = vmatprep.subr.mxu0 0.0
        %268 = vmatpush2.msra.mxu0 0.0
        %269 = vmatprep.subr.mxu0 0.0
        %270 = vmatpush2.msra.mxu0 0.0
        %271 = vmatprep.subr.mxu0 0.0
        %272 = vmatpush2.msra.mxu0 0.0
        %273 = vmatprep.subr.mxu0 0.0
        %274 = vmatpush2.msra.mxu0 0.0
        %275 = vmatprep.subr.mxu0 0.0
        %276 = vmatpush2.msra.mxu0 0.0
        %277 = vmatprep.subr.mxu0 0.0
        %278 = vmatpush2.msra.mxu0 0.0
        %279 = vmatprep.mubr.f32.mxu0 0.0
        %280 = vmatmul.mubr.f32.gmra.mxu0 %v213
        %v281 = vpop.f32.mrf.mxu0
        %v282 = vadd.f32 %v209, %v281
        %v283 = vpop.f32.mrf.mxu0
        %284 = vdwg.mxu0
        %v285 = vmax.f32 %v282, 0.0
        %vm286 = vcmask 130048
        %287 = vst.msk [vmem:[%s202] sm:$0xff] %vm286, %v285
        %s288 = sand.u32 %s112, 1
        %s289 = scalar_lea.sflag [#allocation4], %s288
        %s290 = sand.u32 %s112, 1
        %s291 = smul.addr %s290, 8
        %s292 = scalar_lea.vmem [#allocation5], %s291
        // Predicated region
        $region37: #{tpu_custom_call.1} parent=31 // pred_check
          %p293 = pneg %p122
        $region38: #{tpu_custom_call.1} parent=31 // pred_check_branch
          %295 = sbr.rel (%p293) target = $region40
        $region39: #{tpu_custom_call.1} parent=31 // pred_region
          %s297 = ssub.s32 128, 128
          %298 = vsyncadd %s289, %s297
          %s299 = sadd.s32 %s25, %s24
          %s300 = smul.addr %s299, 128
          %s301 = scalar_lea.hbm %s3, %s300
          %s303 = sshll.u32 %s292, 4
          %s304 = int_to_ptr.vmem [resolvable:$true] %s303
          %306 = dma.vmem_to_hbm [thread:$0]  %s304, 128, %s301, %s289
        $region40: #{tpu_custom_call.1} parent=31 // pred_fallthru
          _
      $region32: #{tpu_custom_call.1} parent=5 // pred_fallthru
        _
      %p307 = scmp.le.s32.totalorder 2, %s15
      // Predicated region
      $region41: #{tpu_custom_call.1} parent=5 // pred_check
        %p308 = pneg %p307
      $region42: #{tpu_custom_call.1} parent=5 // pred_check_branch
        %310 = sbr.rel (%p308) target = $region44
      $region43: #{tpu_custom_call.1} parent=5 // pred_region
        %s311 = ssub.s32 %s15, 2
        // Predicated region
        $region45: #{tpu_custom_call.1} parent=43 // pred_check
          %p312 = pneg %p128
        $region46: #{tpu_custom_call.1} parent=43 // pred_check_branch
          %314 = sbr.rel (%p312) target = $region48
        $region47: #{tpu_custom_call.1} parent=43 // pred_region
          %s315 = sand.u32 %s113, 1
          %s316 = scalar_lea.sflag [#allocation4], %s315
          %s317 = sand.u32 %s113, 1
          %s318 = smul.addr %s317, 8
          %s319 = scalar_lea.vmem [#allocation5], %s318
          %320 = dma.done %s316, 128
        $region48: #{tpu_custom_call.1} parent=43 // pred_fallthru
          _
      $region44: #{tpu_custom_call.1} parent=5 // pred_fallthru
        _
    $region6: #{tpu_custom_call.1} parent=1 // loop_footer
      %s19 = sadd.s32 1, %s15
    $region7: #{tpu_custom_call.1} parent=1 // loop_footer_branch
      %14 = sbr.rel target = $region3
    $region8: #{tpu_custom_call.1} parent=1 // loop_exit
      _
    %321 = vsyncpa [#allocation3], 1
    %s322 = scalar_lea.sflag [#allocation3], 1
    %323 = vsyncpa %s322, 1
    %324 = vsyncpa [#allocation4], 1
    %s325 = scalar_lea.sflag [#allocation4], 1
    %326 = vsyncpa %s325, 1

</llo_original>
